<compile_context>
chip_gen: v5e
topology: v5e:2x2
jax: 0.10.0
libtpu: 0.0.40
codegen_flags: <defaults>
</compile_context>

<pallas_src>
import functools
import math

import jax
import jax.numpy as jnp
from jax.experimental import pallas as pl
from jax.experimental.pallas import tpu as pltpu


# ----------------------------- kernels --------------------------------------


def _layer_norm(z, gamma, beta, eps):
    # Both reductions straight from z (no serialization through (z - mean)).
    mean = jnp.mean(z, axis=-1, keepdims=True)
    var = jnp.maximum(jnp.mean(z * z, axis=-1, keepdims=True) - mean * mean, 0.0)
    inv = jax.lax.rsqrt(var + eps)                      # EUP slot
    return (z - mean) * inv * gamma + beta


def _ffn_fused_kernel(x_ref, w1_ref, b1_ref, w2_ref, b2_ref,
                      gamma_ref, beta_ref, o_ref, *, eps):
    """One row tile per grid step; W1/W2 fully resident (single-buffered) in VMEM."""
    x = x_ref[...]                                      # (br, D), matmul dtype
    # Linear1 (MXU, f32 accumulation) -> bias -> ReLU.  Dropout = identity (eval).
    h = jnp.dot(x, w1_ref[...], preferred_element_type=jnp.float32)
    h = jnp.maximum(h + b1_ref[...], 0.0)
    # Linear2: feed the MXU in the matmul dtype, accumulate in f32.
    y = jnp.dot(h.astype(w2_ref.dtype), w2_ref[...],
                preferred_element_type=jnp.float32) + b2_ref[...]
    # Residual add (outer dropout = identity in eval mode) + LayerNorm.
    z = y + x.astype(jnp.float32)
    o_ref[...] = _layer_norm(z, gamma_ref[...], beta_ref[...], eps).astype(o_ref.dtype)


def _ffn_dff_tiled_kernel(x_ref, w1_ref, b1_ref, w2_ref, b2_ref,
                          gamma_ref, beta_ref, o_ref, acc_ref, *, eps):
    """Same math with dim_feedforward tiled as a reduction grid axis (axis 1)."""
    k = pl.program_id(1)

    @pl.when(k == 0)
    def _():
        acc_ref[...] = jnp.zeros_like(acc_ref)

    x = x_ref[...]                                      # (br, D), matmul dtype
    h = jnp.dot(x, w1_ref[...], preferred_element_type=jnp.float32)
    h = jnp.maximum(h + b1_ref[...], 0.0)               # (br, tk)
    acc_ref[...] += jnp.dot(h.astype(w2_ref.dtype), w2_ref[...],
                            preferred_element_type=jnp.float32)

    @pl.when(k == pl.num_programs(1) - 1)
    def _():
        z = acc_ref[...] + b2_ref[...] + x.astype(jnp.float32)
        o_ref[...] = _layer_norm(z, gamma_ref[...], beta_ref[...],
                                 eps).astype(o_ref.dtype)


# ----------------------------- wrapper ---------------------------------------


def _round_up(x, m):
    return (x + m - 1) // m * m


def _choose_block_rows(M, D, hidden_cols, itemsize, resident_bytes,
                       vmem_budget_bytes):
    # bf16 packs 16 rows per sublane tile; keep row tiles sublane-friendly.
    min_rows = 16 if itemsize < 4 else 8

    def est(br):
        return (2 * br * D * itemsize          # input tiles (double-buffered)
                + 2 * br * D * 4               # output tiles (double-buffered)
                + 3 * br * hidden_cols * 4     # hidden activation + f32 temps
                + br * D * 4                   # accumulator / LN temps
                + resident_bytes)              # resident weights / LN params

    if M <= min_rows:
        return min_rows
    # Cap so the row grid has >= 2 steps (keeps v7x's 2nd TensorCore busy);
    # candidate ladder prefers multiples of 256 (v6e/v7x MXU), then 128 (v5e).
    cap = _round_up(-(-M // 2), min_rows)
    for br in (1024, 512, 256, 128, 64, 32, 16, 8):
        if br < min_rows:
            break
        if br <= cap and est(br) <= vmem_budget_bytes:
            return br
    return min_rows


def prepare_params(params, *, matmul_dtype=jnp.bfloat16):
    """One-time weight prep (do this OUTSIDE the hot path): transpose the
    nn.Linear weights to (in, out) and cast the MXU operands once."""
    Dff, D = params["w1"].shape
    return {
        "w1_t": params["w1"].T.astype(matmul_dtype),          # (D, Dff)
        "w2_t": params["w2"].T.astype(matmul_dtype),          # (Dff, D)
        "b1": params["b1"].reshape(1, Dff).astype(jnp.float32),
        "b2": params["b2"].reshape(1, D).astype(jnp.float32),
        "gamma": params["gamma"].reshape(1, D).astype(jnp.float32),
        "beta": params["beta"].reshape(1, D).astype(jnp.float32),
        "matmul_dtype": matmul_dtype,
    }


def feed_forward_block(seq, prepared, *, eps=1e-5, block_rows=None,
                       dff_block=None, vmem_budget_bytes=48 * 1024 * 1024):
    """seq: (..., D). FeedForwardBlock forward pass (eval mode)."""
    orig_shape = seq.shape
    orig_dtype = seq.dtype
    D = orig_shape[-1]
    Dff = prepared["w1_t"].shape[1]
    mdt = prepared["matmul_dtype"]
    itemsize = jnp.dtype(mdt).itemsize

    # Flatten leading dims into one lane-dense row axis; cast MXU operand once.
    x2d = seq.reshape(-1, D).astype(mdt)
    M = x2d.shape[0]

    # Decide whether to keep W1/W2 fully resident or stream Dff tiles.
    if dff_block is not None:
        tk = int(dff_block)
        use_dff_tiling = True
    elif Dff >= 2048:
        tk = next((t for t in (2048, 1024, 512, 256) if Dff % t == 0), None)
        use_dff_tiling = tk is not None
    else:
        tk = None
        use_dff_tiling = False
    if use_dff_tiling:
        assert Dff % tk == 0 and tk % 128 == 0, "dff_block must tile Dff in 128s"

    if use_dff_tiling:
        hidden_cols = tk
        resident_bytes = 2 * 2 * D * tk * itemsize + (2 * D + 2 * tk) * 4
    else:
        hidden_cols = Dff
        resident_bytes = 2 * D * Dff * itemsize + (2 * D + Dff) * 4

    if block_rows is None:
        block_rows = _choose_block_rows(M, D, hidden_cols, itemsize,
                                        resident_bytes, vmem_budget_bytes)

    Mp = _round_up(M, block_rows)
    if Mp != M:
        x2d = jnp.pad(x2d, ((0, Mp - M), (0, 0)))

    vmem_est = (2 * block_rows * D * itemsize + 2 * block_rows * D * 4
                + 3 * block_rows * hidden_cols * 4 + block_rows * D * 4
                + resident_bytes)
    vmem_limit = int(max(32 * 1024 * 1024,
                         min(vmem_budget_bytes, 2 * vmem_est)))

    # Whole-array, single-buffered VMEM residency for the re-used operands.
    vmem_resident = pl.BlockSpec(memory_space=pltpu.MemorySpace.VMEM)

    if not use_dff_tiling:
        out = pl.pallas_call(
            functools.partial(_ffn_fused_kernel, eps=eps),
            out_shape=jax.ShapeDtypeStruct((Mp, D), orig_dtype),
            grid_spec=pltpu.PrefetchScalarGridSpec(
                num_scalar_prefetch=0,
                grid=(Mp // block_rows,),
                in_specs=[
                    pl.BlockSpec((block_rows, D), lambda i: (i, 0)),   # x rows
                    vmem_resident,                                     # W1^T
                    vmem_resident,                                     # b1
                    vmem_resident,                                     # W2^T
                    vmem_resident,                                     # b2
                    vmem_resident,                                     # gamma
                    vmem_resident,                                     # beta
                ],
                out_specs=pl.BlockSpec((block_rows, D), lambda i: (i, 0)),
            ),
            compiler_params=pltpu.CompilerParams(
                dimension_semantics=("parallel",),
                vmem_limit_bytes=vmem_limit),
        )(x2d, prepared["w1_t"], prepared["b1"], prepared["w2_t"],
          prepared["b2"], prepared["gamma"], prepared["beta"])
    else:
        out = pl.pallas_call(
            functools.partial(_ffn_dff_tiled_kernel, eps=eps),
            out_shape=jax.ShapeDtypeStruct((Mp, D), orig_dtype),
            grid_spec=pltpu.PrefetchScalarGridSpec(
                num_scalar_prefetch=0,
                grid=(Mp // block_rows, Dff // tk),
                in_specs=[
                    pl.BlockSpec((block_rows, D), lambda i, k: (i, 0)),  # x rows
                    pl.BlockSpec((D, tk), lambda i, k: (0, k)),          # W1^T tile
                    pl.BlockSpec((1, tk), lambda i, k: (0, k)),          # b1 tile
                    pl.BlockSpec((tk, D), lambda i, k: (k, 0)),          # W2^T tile
                    vmem_resident,                                       # b2
                    vmem_resident,                                       # gamma
                    vmem_resident,                                       # beta
                ],
                out_specs=pl.BlockSpec((block_rows, D), lambda i, k: (i, 0)),
                scratch_shapes=[pltpu.VMEM((block_rows, D), jnp.float32)],
            ),
            compiler_params=pltpu.CompilerParams(
                dimension_semantics=("parallel", "arbitrary"),
                vmem_limit_bytes=vmem_limit),
        )(x2d, prepared["w1_t"], prepared["b1"], prepared["w2_t"],
          prepared["b2"], prepared["gamma"], prepared["beta"])

    if Mp != M:
        out = out[:M]
    return out.reshape(orig_shape)


# ----------------------------- references ------------------------------------


def _reference_f32(seq, params, eps=1e-5):
    """Exact (f32) forward matching the PyTorch module in eval mode."""
    h = jnp.maximum(seq @ params["w1"].T + params["b1"], 0.0)
    y = h @ params["w2"].T + params["b2"]
    z = y + seq
    mean = jnp.mean(z, axis=-1, keepdims=True)
    var = jnp.mean((z - mean) ** 2, axis=-1, keepdims=True)
    return (z - mean) / jnp.sqrt(var + eps) * params["gamma"] + params["beta"]


def _reference_matmul_dtype(seq, params, eps=1e-5, matmul_dtype=jnp.bfloat16):
    """Reference that mirrors the kernel's dtype policy (low-precision MXU
    operands, f32 accumulation / elementwise) for a tight comparison."""
    D = seq.shape[-1]
    x = seq.reshape(-1, D).astype(matmul_dtype)
    w1t = params["w1"].T.astype(matmul_dtype)
    w2t = params["w2"].T.astype(matmul_dtype)
    h = jnp.dot(x, w1t, preferred_element_type=jnp.float32)
    h = jnp.maximum(h + params["b1"], 0.0)
    y = jnp.dot(h.astype(matmul_dtype), w2t,
                preferred_element_type=jnp.float32) + params["b2"]
    z = y + x.astype(jnp.float32)
    mean = jnp.mean(z, axis=-1, keepdims=True)
    var = jnp.mean((z - mean) ** 2, axis=-1, keepdims=True)
    out = (z - mean) / jnp.sqrt(var + eps) * params["gamma"] + params["beta"]
    return out.reshape(seq.shape)


# ----------------------------- demo / check ----------------------------------


if __name__ == "__main__":
    N, S, D, DFF = 2, 16, 128, 256   # batch, seq, embed_dim, dim_feedforward

    key0 = jax.random.PRNGKey(0)
    ks = jax.random.split(key0, 7)

    # nn.Linear-style deterministic init: weight (out, in), bias (out,).
    bound1 = 1.0 / math.sqrt(D)
    bound2 = 1.0 / math.sqrt(DFF)
    params = {
        "w1": jax.random.uniform(ks[0], (DFF, D), jnp.float32, -bound1, bound1),
        "b1": jax.random.uniform(ks[1], (DFF,), jnp.float32, -bound1, bound1),
        "w2": jax.random.uniform(ks[2], (D, DFF), jnp.float32, -bound2, bound2),
        "b2": jax.random.uniform(ks[3], (D,), jnp.float32, -bound2, bound2),
        # LayerNorm affine params (PyTorch default ones/zeros; randomized a bit
        # so the affine path is exercised).
        "gamma": 1.0 + 0.1 * jax.random.normal(ks[4], (D,), jnp.float32),
        "beta": 0.1 * jax.random.normal(ks[5], (D,), jnp.float32),
    }
    seq = jax.random.normal(ks[6], (N, S, D), jnp.float32)

    ref_f32 = _reference_f32(seq, params)
    ref_bf16 = _reference_matmul_dtype(seq, params, matmul_dtype=jnp.bfloat16)

    # 1) Default path: bf16 MXU operands, f32 accumulation, Dff resident.
    prep_bf16 = prepare_params(params, matmul_dtype=jnp.bfloat16)
    out = jax.block_until_ready(feed_forward_block(seq, prep_bf16))
    assert out.shape == (N, S, D)
    assert jnp.allclose(out, ref_bf16, atol=2e-3, rtol=2e-3), \
        "bf16 fused kernel mismatch vs dtype-mirrored reference"
    assert jnp.allclose(out, ref_f32, atol=5e-2, rtol=5e-2), \
        "bf16 fused kernel drifted too far from the f32 module semantics"

    # 2) Dff-tiled reduction path (exercised here by forcing a small tile).
    out_tiled = jax.block_until_ready(
        feed_forward_block(seq, prep_bf16, dff_block=128))
    assert jnp.allclose(out_tiled, ref_bf16, atol=2e-3, rtol=2e-3), \
        "bf16 Dff-tiled kernel mismatch vs dtype-mirrored reference"

    # 3) Full-precision path (dtype-gated): f32 operands end to end.
    #    Tolerance accounts for TPU default-precision f32 matmul passes.
    prep_f32 = prepare_params(params, matmul_dtype=jnp.float32)
    out_f32 = jax.block_until_ready(feed_forward_block(seq, prep_f32))
    assert jnp.allclose(out_f32, ref_f32, atol=1e-2, rtol=1e-2), \
        "f32 kernel mismatch vs reference"

    print("KERNEL_OK")
</pallas_src>

<mosaic_0001>
module attributes {stable_mosaic.version = 11 : i64} {
  func.func @_ffn_fused_kernel(%arg0: i32, %arg1: memref<16x128xbf16, #tpu.memory_space<vmem>>, %arg2: memref<128x256xbf16, #tpu.memory_space<vmem>>, %arg3: memref<1x256xf32, #tpu.memory_space<vmem>>, %arg4: memref<256x128xbf16, #tpu.memory_space<vmem>>, %arg5: memref<1x128xf32, #tpu.memory_space<vmem>>, %arg6: memref<1x128xf32, #tpu.memory_space<vmem>>, %arg7: memref<1x128xf32, #tpu.memory_space<vmem>>, %arg8: memref<16x128xf32, #tpu.memory_space<vmem>>) attributes {dimension_semantics = [#tpu.dimension_semantics<parallel>], iteration_bounds = array<i64: 2>, scalar_prefetch = 0 : i64, scratch_operands = 0 : i64, tpu.core_type = #tpu.core_type<tc>, window_params = [{transform_indices = @transform_0, window_bounds = array<i64: 16, 128>}, {pipeline_mode = #tpu.pipeline_mode<synchronous>, transform_indices = @transform_1, window_bounds = array<i64: 128, 256>}, {pipeline_mode = #tpu.pipeline_mode<synchronous>, transform_indices = @transform_2, window_bounds = array<i64: 1, 256>}, {pipeline_mode = #tpu.pipeline_mode<synchronous>, transform_indices = @transform_3, window_bounds = array<i64: 256, 128>}, {pipeline_mode = #tpu.pipeline_mode<synchronous>, transform_indices = @transform_4, window_bounds = array<i64: 1, 128>}, {pipeline_mode = #tpu.pipeline_mode<synchronous>, transform_indices = @transform_5, window_bounds = array<i64: 1, 128>}, {pipeline_mode = #tpu.pipeline_mode<synchronous>, transform_indices = @transform_6, window_bounds = array<i64: 1, 128>}, {transform_indices = @transform_7, window_bounds = array<i64: 16, 128>}]} {
    %c0 = arith.constant 0 : index
    %c0_0 = arith.constant 0 : index
    %0 = vector.load %arg1[%c0, %c0_0] : memref<16x128xbf16, #tpu.memory_space<vmem>>, vector<16x128xbf16>
    %c0_1 = arith.constant 0 : index
    %c0_2 = arith.constant 0 : index
    %1 = vector.load %arg2[%c0_1, %c0_2] : memref<128x256xbf16, #tpu.memory_space<vmem>>, vector<128x256xbf16>
    %cst = arith.constant dense<0.000000e+00> : vector<16x256xf32>
    %2 = tpu.matmul %0, %1, %cst {dimension_numbers = #tpu.dot_dimension_numbers<[1], [0], [0], [1], [0, 0, 1, 1], [], []>} : vector<16x128xbf16>, vector<128x256xbf16>, vector<16x256xf32> -> vector<16x256xf32>
    %c0_3 = arith.constant 0 : index
    %c0_4 = arith.constant 0 : index
    %3 = vector.load %arg3[%c0_3, %c0_4] : memref<1x256xf32, #tpu.memory_space<vmem>>, vector<1x256xf32>
    %4 = vector.broadcast %3 : vector<1x256xf32> to vector<16x256xf32>
    %5 = arith.addf %2, %4 : vector<16x256xf32>
    %cst_5 = arith.constant 0.000000e+00 : f32
    %6 = vector.broadcast %cst_5 : f32 to vector<16x256xf32>
    %7 = arith.maximumf %5, %6 : vector<16x256xf32>
    %8 = arith.truncf %7 : vector<16x256xf32> to vector<16x256xbf16>
    %c0_6 = arith.constant 0 : index
    %c0_7 = arith.constant 0 : index
    %9 = vector.load %arg4[%c0_6, %c0_7] : memref<256x128xbf16, #tpu.memory_space<vmem>>, vector<256x128xbf16>
    %cst_8 = arith.constant dense<0.000000e+00> : vector<16x128xf32>
    %10 = tpu.matmul %8, %9, %cst_8 {dimension_numbers = #tpu.dot_dimension_numbers<[1], [0], [0], [1], [0, 0, 1, 1], [], []>} : vector<16x256xbf16>, vector<256x128xbf16>, vector<16x128xf32> -> vector<16x128xf32>
    %c0_9 = arith.constant 0 : index
    %c0_10 = arith.constant 0 : index
    %11 = vector.load %arg5[%c0_9, %c0_10] : memref<1x128xf32, #tpu.memory_space<vmem>>, vector<1x128xf32>
    %12 = vector.broadcast %11 : vector<1x128xf32> to vector<16x128xf32>
    %13 = arith.addf %10, %12 : vector<16x128xf32>
    %14 = arith.extf %0 : vector<16x128xbf16> to vector<16x128xf32>
    %15 = arith.addf %13, %14 : vector<16x128xf32>
    %c0_11 = arith.constant 0 : index
    %c0_12 = arith.constant 0 : index
    %16 = vector.load %arg6[%c0_11, %c0_12] : memref<1x128xf32, #tpu.memory_space<vmem>>, vector<1x128xf32>
    %c0_13 = arith.constant 0 : index
    %c0_14 = arith.constant 0 : index
    %17 = vector.load %arg7[%c0_13, %c0_14] : memref<1x128xf32, #tpu.memory_space<vmem>>, vector<1x128xf32>
    %cst_15 = arith.constant dense<0.000000e+00> : vector<16xf32>
    %18 = vector.multi_reduction <add>, %15, %cst_15 [1] : vector<16x128xf32> to vector<16xf32>
    %19 = vector.shape_cast %18 : vector<16xf32> to vector<16x1xf32>
    %cst_16 = arith.constant 1.280000e+02 : f32
    %20 = vector.broadcast %cst_16 : f32 to vector<16x1xf32>
    %21 = arith.divf %19, %20 : vector<16x1xf32>
    %22 = arith.mulf %15, %15 : vector<16x128xf32>
    %cst_17 = arith.constant dense<0.000000e+00> : vector<16xf32>
    %23 = vector.multi_reduction <add>, %22, %cst_17 [1] : vector<16x128xf32> to vector<16xf32>
    %24 = vector.shape_cast %23 : vector<16xf32> to vector<16x1xf32>
    %cst_18 = arith.constant 1.280000e+02 : f32
    %25 = vector.broadcast %cst_18 : f32 to vector<16x1xf32>
    %26 = arith.divf %24, %25 : vector<16x1xf32>
    %27 = arith.mulf %21, %21 : vector<16x1xf32>
    %28 = arith.subf %26, %27 : vector<16x1xf32>
    %cst_19 = arith.constant 0.000000e+00 : f32
    %29 = vector.broadcast %cst_19 : f32 to vector<16x1xf32>
    %30 = arith.maximumf %28, %29 : vector<16x1xf32>
    %cst_20 = arith.constant 9.99999974E-6 : f32
    %31 = vector.broadcast %cst_20 : f32 to vector<16x1xf32>
    %32 = arith.addf %30, %31 : vector<16x1xf32>
    %33 = math.rsqrt %32 : vector<16x1xf32>
    %34 = vector.broadcast %21 : vector<16x1xf32> to vector<16x128xf32>
    %35 = arith.subf %15, %34 : vector<16x128xf32>
    %36 = vector.broadcast %33 : vector<16x1xf32> to vector<16x128xf32>
    %37 = arith.mulf %35, %36 : vector<16x128xf32>
    %38 = vector.broadcast %16 : vector<1x128xf32> to vector<16x128xf32>
    %39 = arith.mulf %37, %38 : vector<16x128xf32>
    %40 = vector.broadcast %17 : vector<1x128xf32> to vector<16x128xf32>
    %41 = arith.addf %39, %40 : vector<16x128xf32>
    %c0_21 = arith.constant 0 : index
    %c0_22 = arith.constant 0 : index
    %42 = vector.load %arg8[%c0_21, %c0_22] : memref<16x128xf32, #tpu.memory_space<vmem>>, vector<16x128xf32>
    tpu.vector_store %arg8[%c0_21, %c0_22], %41 {strides = array<i32>} : memref<16x128xf32, #tpu.memory_space<vmem>>, vector<16x128xf32>,
    return
  }
  func.func @transform_0(%arg0: i32) -> (i32, i32) {
    %c0_i32 = arith.constant 0 : i32
    %c0_i32_0 = arith.constant 0 : i32
    return %arg0, %c0_i32 : i32, i32
  }
  func.func @transform_1(%arg0: i32) -> (i32, i32) {
    %c0_i32 = arith.constant 0 : i32
    %c0_i32_0 = arith.constant 0 : i32
    %c0_i32_1 = arith.constant 0 : i32
    return %c0_i32, %c0_i32_0 : i32, i32
  }
  func.func @transform_2(%arg0: i32) -> (i32, i32) {
    %c0_i32 = arith.constant 0 : i32
    %c0_i32_0 = arith.constant 0 : i32
    %c0_i32_1 = arith.constant 0 : i32
    return %c0_i32, %c0_i32_0 : i32, i32
  }
  func.func @transform_3(%arg0: i32) -> (i32, i32) {
    %c0_i32 = arith.constant 0 : i32
    %c0_i32_0 = arith.constant 0 : i32
    %c0_i32_1 = arith.constant 0 : i32
    return %c0_i32, %c0_i32_0 : i32, i32
  }
  func.func @transform_4(%arg0: i32) -> (i32, i32) {
    %c0_i32 = arith.constant 0 : i32
    %c0_i32_0 = arith.constant 0 : i32
    %c0_i32_1 = arith.constant 0 : i32
    return %c0_i32, %c0_i32_0 : i32, i32
  }
  func.func @transform_5(%arg0: i32) -> (i32, i32) {
    %c0_i32 = arith.constant 0 : i32
    %c0_i32_0 = arith.constant 0 : i32
    %c0_i32_1 = arith.constant 0 : i32
    return %c0_i32, %c0_i32_0 : i32, i32
  }
  func.func @transform_6(%arg0: i32) -> (i32, i32) {
    %c0_i32 = arith.constant 0 : i32
    %c0_i32_0 = arith.constant 0 : i32
    %c0_i32_1 = arith.constant 0 : i32
    return %c0_i32, %c0_i32_0 : i32, i32
  }
  func.func @transform_7(%arg0: i32) -> (i32, i32) {
    %c0_i32 = arith.constant 0 : i32
    %c0_i32_0 = arith.constant 0 : i32
    return %arg0, %c0_i32 : i32, i32
  }
}

</mosaic_0001>

<llo_original>
// kernel: tpu_custom_call.1
$region0: #{tpu_custom_call.1}
  #allocation0 [shape = 'u32[]', space=smem, size = 0x4, offset = 0x4, fixed_abs, tag = 'smem constant byte address 0x4 - core index']
  #allocation1 [shape = 'u32[72,128]{1,0:T(1,128)}', space=vmem, size = 0x9000, scoped, tag = 'internal scratch']
  %s0 = inlined_call_operand.hbm [shape: bf16[32,128], index: 0, kind: input, shape index: {}]
  %s1 = inlined_call_operand.hbm [shape: bf16[128,256], index: 1, kind: input, shape index: {}]
  %s2 = inlined_call_operand.hbm [shape: f32[1,256], index: 2, kind: input, shape index: {}]
  %s3 = inlined_call_operand.hbm [shape: bf16[256,128], index: 3, kind: input, shape index: {}]
  %s4 = inlined_call_operand.vmem [shape: f32[1,128], index: 4, kind: input, shape index: {}]
  %s5 = inlined_call_operand.vmem [shape: f32[1,128], index: 5, kind: input, shape index: {}]
  %s6 = inlined_call_operand.vmem [shape: f32[1,128], index: 6, kind: input, shape index: {}]
  %s7 = inlined_call_operand.hbm [shape: f32[32,128], index: 7, kind: output, shape index: {}]
  %s8 = sld [smem:[#allocation0]]
  $region77: #{tpu_custom_call.1} parent=0
    _
  %s10 = ssub.s32 1, %s8
  %s11 = scalar_select 0, %s10, %s8
  $region1: #{tpu_custom_call.1} parent=0
    #allocation2 [shape = 'u8[8192]{0}', space=vmem, size = 0x2000, scoped, tag = 'input window, operand 0']
    #allocation3 [shape = 's32[2]{0}', space=sflag, size = 0x8, scoped, tag = 'scoped memory for tpu_custom_call.1']
    #allocation4 [shape = 's32[2]{0}', space=sflag, size = 0x8, scoped, tag = 'scoped memory for tpu_custom_call.1']
    #allocation5 [shape = 'u8[65536]{0}', space=vmem, size = 0x10000, scoped, tag = 'input window, operand 1, single buffered']
    #allocation6 [shape = 's32[1]{0}', space=sflag, size = 0x4, scoped, tag = 'scoped memory for tpu_custom_call.1']
    #allocation7 [shape = 'u8[1024]{0}', space=vmem, size = 0x400, scoped, tag = 'input window, operand 2, single buffered']
    #allocation8 [shape = 'u8[65536]{0}', space=vmem, size = 0x10000, scoped, tag = 'input window, operand 3, single buffered']
    #allocation9 [shape = 's32[1]{0}', space=sflag, size = 0x4, scoped, tag = 'scoped memory for tpu_custom_call.1']
    #allocation10 [shape = 'u8[16384]{0}', space=vmem, size = 0x4000, scoped, tag = 'output window, operand 0']
    %12 = vsyncpa [#allocation3], 0
    %s13 = scalar_lea.sflag [#allocation3], 1
    %14 = vsyncpa %s13, 0
    %15 = vsyncpa [#allocation6], 0
    %16 = vsyncpa [#allocation9], 0
    %17 = vsyncpa [#allocation4], 0
    %s18 = scalar_lea.sflag [#allocation4], 1
    %19 = vsyncpa %s18, 0
    loop: start=0, step=1, limit=4
    $region2: #{tpu_custom_call.1} parent=1 // loop_pre_header
      _
    $region3: #{tpu_custom_call.1} parent=1 // loop_header
      %s21 = sphi 0, %s25
      %p22 = scmp.ge.s32.totalorder %s21, 4
      %s31 = sphi 0, %s33
      %s34 = sphi 0, %s31
      %s35 = sphi 0, %s34
      %s51 = sphi 0, %s35
      %s55 = sphi 0, %s55
      %s57 = sphi 0, %s55
      %s58 = sphi 0, %s57
      %s72 = sphi 0, %s58
      %s76 = sphi 0, %s76
      %s78 = sphi 0, %s76
      %s79 = sphi 0, %s78
      %s93 = sphi 0, %s79
      %s97 = sphi 0, %s97
      %s99 = sphi 0, %s97
      %s100 = sphi 0, %s99
      %s114 = sphi 0, %s100
      %s118 = sphi 0, %s118
      %s120 = sphi 0, %s118
      %s121 = sphi 0, %s120
      %s135 = sphi 0, %s121
      %s139 = sphi 0, %s139
      %s141 = sphi 0, %s139
      %s142 = sphi 0, %s141
      %s156 = sphi 0, %s142
      %s160 = sphi 0, %s160
      %s162 = sphi 0, %s160
      %s163 = sphi 0, %s162
      %s177 = sphi 0, %s163
      %s183 = sphi 0, %s185
      %s186 = sphi 0, %s183
      %s187 = sphi 0, %s186
      %s203 = sphi 0, %s187
    $region4: #{tpu_custom_call.1} parent=1 // loop_header_branch
      %24 = sbr.rel (%p22) target = $region8
    $region5: #{tpu_custom_call.1} parent=1 // loop_body
      %s26 = ssub.s32 %s21, 1
      %s27 = ssub.s32 %s21, 2
      %s28 = sadd.s32 %s21, 1
      %s29 = ssub.s32 %s21, %s28
      %p30 = scmp.eq.s32.totalorder %s29, 0
      %s32 = sadd.s32 %s31, 1
      %s33 = scalar_select %p30, %s31, %s32
      %p36 = pneg %p30
      %p37 = scmp.eq.s32.totalorder %s21, 1
      %p38 = por %p36, %p37
      %p39 = scmp.ne.s32.totalorder %s31, %s34
      %p40 = scmp.eq.s32.totalorder %s21, 0
      %p41 = por %p39, %p40
      %p42 = scmp.ne.s32.totalorder %s31, %s34
      %p43 = scmp.eq.s32.totalorder %s26, 1
      %p44 = por %p42, %p43
      %p45 = scmp.ne.s32.totalorder %s34, %s35
      %p46 = scmp.eq.s32.totalorder %s26, 0
      %p47 = por %p45, %p46
      %p48 = scmp.ne.s32.totalorder %s34, %s35
      %p49 = scmp.eq.s32.totalorder %s27, 1
      %p50 = por %p48, %p49
      %p52 = scmp.ne.s32.totalorder %s35, %s51
      %p53 = scmp.eq.s32.totalorder %s27, 0
      %p54 = por %p52, %p53
      %s56 = sadd.s32 %s55, 1
      %p59 = scmp.eq.s32.totalorder %s21, 1
      %p60 = scmp.ne.s32.totalorder %s55, %s57
      %p61 = scmp.eq.s32.totalorder %s21, 0
      %p62 = por %p60, %p61
      %p63 = scmp.ne.s32.totalorder %s55, %s57
      %p64 = scmp.eq.s32.totalorder %s26, 1
      %p65 = por %p63, %p64
      %p66 = scmp.ne.s32.totalorder %s57, %s58
      %p67 = scmp.eq.s32.totalorder %s26, 0
      %p68 = por %p66, %p67
      %p69 = scmp.ne.s32.totalorder %s57, %s58
      %p70 = scmp.eq.s32.totalorder %s27, 1
      %p71 = por %p69, %p70
      %p73 = scmp.ne.s32.totalorder %s58, %s72
      %p74 = scmp.eq.s32.totalorder %s27, 0
      %p75 = por %p73, %p74
      %s77 = sadd.s32 %s76, 1
      %p80 = scmp.eq.s32.totalorder %s21, 1
      %p81 = scmp.ne.s32.totalorder %s76, %s78
      %p82 = scmp.eq.s32.totalorder %s21, 0
      %p83 = por %p81, %p82
      %p84 = scmp.ne.s32.totalorder %s76, %s78
      %p85 = scmp.eq.s32.totalorder %s26, 1
      %p86 = por %p84, %p85
      %p87 = scmp.ne.s32.totalorder %s78, %s79
      %p88 = scmp.eq.s32.totalorder %s26, 0
      %p89 = por %p87, %p88
      %p90 = scmp.ne.s32.totalorder %s78, %s79
      %p91 = scmp.eq.s32.totalorder %s27, 1
      %p92 = por %p90, %p91
      %p94 = scmp.ne.s32.totalorder %s79, %s93
      %p95 = scmp.eq.s32.totalorder %s27, 0
      %p96 = por %p94, %p95
      %s98 = sadd.s32 %s97, 1
      %p101 = scmp.eq.s32.totalorder %s21, 1
      %p102 = scmp.ne.s32.totalorder %s97, %s99
      %p103 = scmp.eq.s32.totalorder %s21, 0
      %p104 = por %p102, %p103
      %p105 = scmp.ne.s32.totalorder %s97, %s99
      %p106 = scmp.eq.s32.totalorder %s26, 1
      %p107 = por %p105, %p106
      %p108 = scmp.ne.s32.totalorder %s99, %s100
      %p109 = scmp.eq.s32.totalorder %s26, 0
      %p110 = por %p108, %p109
      %p111 = scmp.ne.s32.totalorder %s99, %s100
      %p112 = scmp.eq.s32.totalorder %s27, 1
      %p113 = por %p111, %p112
      %p115 = scmp.ne.s32.totalorder %s100, %s114
      %p116 = scmp.eq.s32.totalorder %s27, 0
      %p117 = por %p115, %p116
      %s119 = sadd.s32 %s118, 1
      %p122 = scmp.eq.s32.totalorder %s21, 1
      %p123 = scmp.ne.s32.totalorder %s118, %s120
      %p124 = scmp.eq.s32.totalorder %s21, 0
      %p125 = por %p123, %p124
      %p126 = scmp.ne.s32.totalorder %s118, %s120
      %p127 = scmp.eq.s32.totalorder %s26, 1
      %p128 = por %p126, %p127
      %p129 = scmp.ne.s32.totalorder %s120, %s121
      %p130 = scmp.eq.s32.totalorder %s26, 0
      %p131 = por %p129, %p130
      %p132 = scmp.ne.s32.totalorder %s120, %s121
      %p133 = scmp.eq.s32.totalorder %s27, 1
      %p134 = por %p132, %p133
      %p136 = scmp.ne.s32.totalorder %s121, %s135
      %p137 = scmp.eq.s32.totalorder %s27, 0
      %p138 = por %p136, %p137
      %s140 = sadd.s32 %s139, 1
      %p143 = scmp.eq.s32.totalorder %s21, 1
      %p144 = scmp.ne.s32.totalorder %s139, %s141
      %p145 = scmp.eq.s32.totalorder %s21, 0
      %p146 = por %p144, %p145
      %p147 = scmp.ne.s32.totalorder %s139, %s141
      %p148 = scmp.eq.s32.totalorder %s26, 1
      %p149 = por %p147, %p148
      %p150 = scmp.ne.s32.totalorder %s141, %s142
      %p151 = scmp.eq.s32.totalorder %s26, 0
      %p152 = por %p150, %p151
      %p153 = scmp.ne.s32.totalorder %s141, %s142
      %p154 = scmp.eq.s32.totalorder %s27, 1
      %p155 = por %p153, %p154
      %p157 = scmp.ne.s32.totalorder %s142, %s156
      %p158 = scmp.eq.s32.totalorder %s27, 0
      %p159 = por %p157, %p158
      %s161 = sadd.s32 %s160, 1
      %p164 = scmp.eq.s32.totalorder %s21, 1
      %p165 = scmp.ne.s32.totalorder %s160, %s162
      %p166 = scmp.eq.s32.totalorder %s21, 0
      %p167 = por %p165, %p166
      %p168 = scmp.ne.s32.totalorder %s160, %s162
      %p169 = scmp.eq.s32.totalorder %s26, 1
      %p170 = por %p168, %p169
      %p171 = scmp.ne.s32.totalorder %s162, %s163
      %p172 = scmp.eq.s32.totalorder %s26, 0
      %p173 = por %p171, %p172
      %p174 = scmp.ne.s32.totalorder %s162, %s163
      %p175 = scmp.eq.s32.totalorder %s27, 1
      %p176 = por %p174, %p175
      %p178 = scmp.ne.s32.totalorder %s163, %s177
      %p179 = scmp.eq.s32.totalorder %s27, 0
      %p180 = por %p178, %p179
      %s181 = ssub.s32 %s21, %s28
      %p182 = scmp.eq.s32.totalorder %s181, 0
      %s184 = sadd.s32 %s183, 1
      %s185 = scalar_select %p182, %s183, %s184
      %p188 = pneg %p182
      %p189 = scmp.eq.s32.totalorder %s21, 1
      %p190 = por %p188, %p189
      %p191 = scmp.ne.s32.totalorder %s183, %s186
      %p192 = scmp.eq.s32.totalorder %s21, 0
      %p193 = por %p191, %p192
      %p194 = scmp.ne.s32.totalorder %s183, %s186
      %p195 = scmp.eq.s32.totalorder %s26, 1
      %p196 = por %p194, %p195
      %p197 = scmp.ne.s32.totalorder %s186, %s187
      %p198 = scmp.eq.s32.totalorder %s26, 0
      %p199 = por %p197, %p198
      %p200 = scmp.ne.s32.totalorder %s186, %s187
      %p201 = scmp.eq.s32.totalorder %s27, 1
      %p202 = por %p200, %p201
      %p204 = scmp.ne.s32.totalorder %s187, %s203
      %p205 = scmp.eq.s32.totalorder %s27, 0
      %p206 = por %p204, %p205
      %p207 = scmp.le.s32.totalorder 1, %s21
      %p208 = scmp.lt.s32.totalorder %s21, 3
      %p209 = pnand %p207, %p208
      %p210 = pneg %p209
      // Predicated region
      $region9: #{tpu_custom_call.1} parent=5 // pred_check
        _
      $region10: #{tpu_custom_call.1} parent=5 // pred_check_branch
        %212 = sbr.rel (%p209) target = $region12
      $region11: #{tpu_custom_call.1} parent=5 // pred_region
        %s213 = ssub.s32 %s21, 1
        // Predicated region
        $region13: #{tpu_custom_call.1} parent=11 // pred_check
          %p214 = pneg %p68
        $region14: #{tpu_custom_call.1} parent=11 // pred_check_branch
          %216 = sbr.rel (%p214) target = $region16
        $region15: #{tpu_custom_call.1} parent=11 // pred_region
          %218 = vsyncadd [#allocation6], 0
          %s219 = sshll.u32 %s1, 4
          %s220 = int_to_ptr.hbm [resolvable:$true] %s219
          %s221 = sshll.u32 [#allocation5], 4
          %s222 = int_to_ptr.vmem [resolvable:$true] %s221
          %227 = dma.hbm_to_vmem [thread:$0]  %s220, 2048, %s222, [#allocation6], 128, 128, 8
        $region16: #{tpu_custom_call.1} parent=11 // pred_fallthru
          _
        // Predicated region
        $region17: #{tpu_custom_call.1} parent=11 // pred_check
          %p228 = pneg %p89
        $region18: #{tpu_custom_call.1} parent=11 // pred_check_branch
          %230 = sbr.rel (%p228) target = $region20
        $region19: #{tpu_custom_call.1} parent=11 // pred_region
          %232 = vsyncadd [#allocation6], 0
          %s234 = sshll.u32 %s2, 4
          %s235 = int_to_ptr.hbm [resolvable:$true] %s234
          %s236 = sshll.u32 [#allocation7], 4
          %s237 = int_to_ptr.vmem [resolvable:$true] %s236
          %239 = dma.hbm_to_vmem [thread:$0]  %s235, 32, %s237, [#allocation6]
        $region20: #{tpu_custom_call.1} parent=11 // pred_fallthru
          _
        // Predicated region
        $region21: #{tpu_custom_call.1} parent=11 // pred_check
          %p240 = pneg %p110
        $region22: #{tpu_custom_call.1} parent=11 // pred_check_branch
          %242 = sbr.rel (%p240) target = $region24
        $region23: #{tpu_custom_call.1} parent=11 // pred_region
          %244 = vsyncadd [#allocation9], 0
          %s245 = sshll.u32 %s3, 4
          %s246 = int_to_ptr.hbm [resolvable:$true] %s245
          %s247 = sshll.u32 [#allocation8], 4
          %s248 = int_to_ptr.vmem [resolvable:$true] %s247
          %253 = dma.hbm_to_vmem [thread:$0]  %s246, 2048, %s248, [#allocation9], 64, 64, 4
        $region24: #{tpu_custom_call.1} parent=11 // pred_fallthru
          _
        // Predicated region
        $region25: #{tpu_custom_call.1} parent=11 // pred_check
          %p254 = pneg %p131
        $region26: #{tpu_custom_call.1} parent=11 // pred_check_branch
          %256 = sbr.rel (%p254) target = $region28
        $region27: #{tpu_custom_call.1} parent=11 // pred_region
          _
        $region28: #{tpu_custom_call.1} parent=11 // pred_fallthru
          _
        // Predicated region
        $region29: #{tpu_custom_call.1} parent=11 // pred_check
          %p257 = pneg %p152
        $region30: #{tpu_custom_call.1} parent=11 // pred_check_branch
          %259 = sbr.rel (%p257) target = $region32
        $region31: #{tpu_custom_call.1} parent=11 // pred_region
          _
        $region32: #{tpu_custom_call.1} parent=11 // pred_fallthru
          _
        // Predicated region
        $region33: #{tpu_custom_call.1} parent=11 // pred_check
          %p260 = pneg %p173
        $region34: #{tpu_custom_call.1} parent=11 // pred_check_branch
          %262 = sbr.rel (%p260) target = $region36
        $region35: #{tpu_custom_call.1} parent=11 // pred_region
          _
        $region36: #{tpu_custom_call.1} parent=11 // pred_fallthru
          _
      $region12: #{tpu_custom_call.1} parent=5 // pred_fallthru
        _
      %p263 = scmp.lt.s32.totalorder %s21, 2
      // Predicated region
      $region37: #{tpu_custom_call.1} parent=5 // pred_check
        %p264 = pneg %p263
      $region38: #{tpu_custom_call.1} parent=5 // pred_check_branch
        %266 = sbr.rel (%p264) target = $region40
      $region39: #{tpu_custom_call.1} parent=5 // pred_region
        // Predicated region
        $region41: #{tpu_custom_call.1} parent=39 // pred_check
          %p267 = pneg %p41
        $region42: #{tpu_custom_call.1} parent=39 // pred_check_branch
          %269 = sbr.rel (%p267) target = $region44
        $region43: #{tpu_custom_call.1} parent=39 // pred_region
          %s270 = sand.u32 %s31, 1
          %s271 = scalar_lea.sflag [#allocation3], %s270
          %s272 = sand.u32 %s31, 1
          %s273 = smul.addr %s272, 8
          %s274 = scalar_lea.vmem [#allocation2], %s273
          %s275 = smul.u32 2, %s21
          %277 = vsyncadd %s271, 0
          %s278 = smul.addr %s275, 4
          %s279 = scalar_lea.hbm %s0, %s278
          %s280 = sshll.u32 %s279, 4
          %s281 = int_to_ptr.hbm [resolvable:$true] %s280
          %s282 = sshll.u32 %s274, 4
          %s283 = int_to_ptr.vmem [resolvable:$true] %s282
          %288 = dma.hbm_to_vmem [thread:$0]  %s281, 128, %s283, %s271, 64, 64, 4
        $region44: #{tpu_custom_call.1} parent=39 // pred_fallthru
          _
      $region40: #{tpu_custom_call.1} parent=5 // pred_fallthru
        _
      %p289 = scmp.le.s32.totalorder 1, %s21
      %p290 = scmp.lt.s32.totalorder %s21, 3
      %p291 = pnand %p289, %p290
      %p292 = pneg %p291
      // Predicated region
      $region45: #{tpu_custom_call.1} parent=5 // pred_check
        _
      $region46: #{tpu_custom_call.1} parent=5 // pred_check_branch
        %294 = sbr.rel (%p291) target = $region48
      $region47: #{tpu_custom_call.1} parent=5 // pred_region
        %s295 = ssub.s32 %s21, 1
        %s296 = sand.u32 %s34, 1
        %s297 = scalar_lea.sflag [#allocation3], %s296
        %s298 = sand.u32 %s34, 1
        %s299 = smul.addr %s298, 8
        %s300 = scalar_lea.vmem [#allocation2], %s299
        // Predicated region
        $region49: #{tpu_custom_call.1} parent=47 // pred_check
          %p301 = pneg %p47
        $region50: #{tpu_custom_call.1} parent=47 // pred_check_branch
          %303 = sbr.rel (%p301) target = $region52
        $region51: #{tpu_custom_call.1} parent=47 // pred_region
          %305 = dma.done %s297, 128
        $region52: #{tpu_custom_call.1} parent=47 // pred_fallthru
          _
        // Predicated region
        $region53: #{tpu_custom_call.1} parent=47 // pred_check
          %p306 = pneg %p68
        $region54: #{tpu_custom_call.1} parent=47 // pred_check_branch
          %308 = sbr.rel (%p306) target = $region56
        $region55: #{tpu_custom_call.1} parent=47 // pred_region
          %310 = dma.done [#allocation6], 2048
        $region56: #{tpu_custom_call.1} parent=47 // pred_fallthru
          _
        // Predicated region
        $region57: #{tpu_custom_call.1} parent=47 // pred_check
          %p311 = pneg %p89
        $region58: #{tpu_custom_call.1} parent=47 // pred_check_branch
          %313 = sbr.rel (%p311) target = $region60
        $region59: #{tpu_custom_call.1} parent=47 // pred_region
          %315 = dma.done [#allocation6], 32
        $region60: #{tpu_custom_call.1} parent=47 // pred_fallthru
          _
        // Predicated region
        $region61: #{tpu_custom_call.1} parent=47 // pred_check
          %p316 = pneg %p110
        $region62: #{tpu_custom_call.1} parent=47 // pred_check_branch
          %318 = sbr.rel (%p316) target = $region64
        $region63: #{tpu_custom_call.1} parent=47 // pred_region
          %320 = dma.done [#allocation9], 2048
        $region64: #{tpu_custom_call.1} parent=47 // pred_fallthru
          _
        %s321 = sand.u32 %s34, 1
        %s322 = scalar_lea.sflag [#allocation3], %s321
        %s323 = sand.u32 %s34, 1
        %s324 = smul.addr %s323, 8
        %s325 = scalar_lea.vmem [#allocation2], %s324
        %p326 = pneg %p47
        %p327 = pneg %p44
        %p328 = pneg %p68
        %p329 = pneg %p65
        %p330 = pneg %p89
        %p331 = pneg %p86
        %p332 = pneg %p110
        %p333 = pneg %p107
        %p334 = pneg %p131
        %p335 = pneg %p128
        %p336 = pneg %p152
        %p337 = pneg %p149
        %p338 = pneg %p173
        %p339 = pneg %p170
        %p340 = pneg %p199
        %p341 = pneg %p196
        %s342 = sand.u32 %s186, 1
        %s343 = scalar_lea.sflag [#allocation4], %s342
        %s344 = sand.u32 %s186, 1
        %s345 = smul.addr %s344, 16
        %s346 = scalar_lea.vmem [#allocation10], %s345
        %s347 = smul.u32 2, %s26
        %s348 = smul.u32 2, %s26
        %v349 = vld [vmem:[%s300] sm:$0xf]
        %v350 = vld [vmem:[%s300 + $0x4] sm:$0xf]
        %v351 = vld [vmem:[#allocation5] sm:$0xff]
        %v352 = vld [vmem:[#allocation5 + $0x8] sm:$0xff]
        %v353 = vld [vmem:[#allocation5 + $0x10] sm:$0xff]
        %v354 = vld [vmem:[#allocation5 + $0x18] sm:$0xff]
        %v355 = vld [vmem:[#allocation5 + $0x20] sm:$0xff]
        %v356 = vld [vmem:[#allocation5 + $0x28] sm:$0xff]
        %v357 = vld [vmem:[#allocation5 + $0x30] sm:$0xff]
        %v358 = vld [vmem:[#allocation5 + $0x38] sm:$0xff]
        %v359 = vld [vmem:[#allocation5 + $0x40] sm:$0xff]
        %v360 = vld [vmem:[#allocation5 + $0x48] sm:$0xff]
        %v361 = vld [vmem:[#allocation5 + $0x50] sm:$0xff]
        %v362 = vld [vmem:[#allocation5 + $0x58] sm:$0xff]
        %v363 = vld [vmem:[#allocation5 + $0x60] sm:$0xff]
        %v364 = vld [vmem:[#allocation5 + $0x68] sm:$0xff]
        %v365 = vld [vmem:[#allocation5 + $0x70] sm:$0xff]
        %v366 = vld [vmem:[#allocation5 + $0x78] sm:$0xff]
        %v367 = vld [vmem:[#allocation7] sm:$0x3]
        %v369 = vperm.slane %v367, 0
        %v370 = vperm.slane %v367, 1
        %v375 = vunpack.c.l.b16 %v349
        %v376 = vunpack.c.l.b16 %v350
        %v377 = vpack.c.b16 %v376, %v375
        %v395 = vunpack.c.l.b16 %v351
        %v396 = vunpack.c.h.b16 %v351
        %v397 = vunpack.c.l.b16 %v352
        %v398 = vunpack.c.h.b16 %v352
        %v399 = vunpack.c.l.b16 %v353
        %v400 = vunpack.c.h.b16 %v353
        %v401 = vunpack.c.l.b16 %v354
        %v402 = vunpack.c.h.b16 %v354
        %v403 = vunpack.c.l.b16 %v355
        %v404 = vunpack.c.h.b16 %v355
        %v405 = vunpack.c.l.b16 %v356
        %v406 = vunpack.c.h.b16 %v356
        %v407 = vunpack.c.l.b16 %v357
        %v408 = vunpack.c.h.b16 %v357
        %v409 = vunpack.c.l.b16 %v358
        %v410 = vunpack.c.h.b16 %v358
        %v411 = vunpack.c.l.b16 %v359
        %v412 = vunpack.c.h.b16 %v359
        %v413 = vunpack.c.l.b16 %v360
        %v414 = vunpack.c.h.b16 %v360
        %v415 = vunpack.c.l.b16 %v361
        %v416 = vunpack.c.h.b16 %v361
        %v417 = vunpack.c.l.b16 %v362
        %v418 = vunpack.c.h.b16 %v362
        %v419 = vunpack.c.l.b16 %v363
        %v420 = vunpack.c.h.b16 %v363
        %v421 = vunpack.c.l.b16 %v364
        %v422 = vunpack.c.h.b16 %v364
        %v423 = vunpack.c.l.b16 %v365
        %v424 = vunpack.c.h.b16 %v365
        %v425 = vunpack.c.l.b16 %v366
        %v426 = vunpack.c.h.b16 %v366
        %v427 = vpack.c.b16 %v397, %v395
        %v428 = vpack.c.b16 %v398, %v396
        %v429 = vpack.c.b16 %v401, %v399
        %v430 = vpack.c.b16 %v402, %v400
        %v431 = vpack.c.b16 %v405, %v403
        %v432 = vpack.c.b16 %v406, %v404
        %v433 = vpack.c.b16 %v409, %v407
        %v434 = vpack.c.b16 %v410, %v408
        %v435 = vpack.c.b16 %v413, %v411
        %v436 = vpack.c.b16 %v414, %v412
        %v437 = vpack.c.b16 %v417, %v415
        %v438 = vpack.c.b16 %v418, %v416
        %v439 = vpack.c.b16 %v421, %v419
        %v440 = vpack.c.b16 %v422, %v420
        %v441 = vpack.c.b16 %v425, %v423
        %v442 = vpack.c.b16 %v426, %v424
        %459 = vmatpush.bf16.msra.mxu0 %v441
        %460 = vmatpush.bf16.msra.mxu0 %v439
        %461 = vmatpush.bf16.msra.mxu0 %v437
        %462 = vmatpush.bf16.msra.mxu0 %v435
        %463 = vmatpush.bf16.msra.mxu0 %v433
        %464 = vmatpush.bf16.msra.mxu0 %v431
        %465 = vmatpush.bf16.msra.mxu0 %v429
        %466 = vmatpush.bf16.msra.mxu0 %v427
        %467 = vmatmul.bf16.gmra.mxu0 %v377
        %v468 = vpop.f32.mrf.mxu0
        %v469 = vadd.f32 %v369, %v468
        %v470 = vpop.f32.mrf.mxu0
        %v471 = vadd.f32 %v369, %v470
        %472 = vdwg.mxu0
        %473 = vmatpush.bf16.msra.mxu0 %v442
        %474 = vmatpush.bf16.msra.mxu0 %v440
        %475 = vmatpush.bf16.msra.mxu0 %v438
        %476 = vmatpush.bf16.msra.mxu0 %v436
        %477 = vmatpush.bf16.msra.mxu0 %v434
        %478 = vmatpush.bf16.msra.mxu0 %v432
        %479 = vmatpush.bf16.msra.mxu0 %v430
        %480 = vmatpush.bf16.msra.mxu0 %v428
        %481 = vmatmul.bf16.gmra.mxu0 %v377
        %v482 = vpop.f32.mrf.mxu0
        %v483 = vadd.f32 %v370, %v482
        %v484 = vpop.f32.mrf.mxu0
        %v485 = vadd.f32 %v370, %v484
        %486 = vdwg.mxu0
        %v487 = vmax.f32 %v469, 0.0
        %v488 = vmax.f32 %v483, 0.0
        %v489 = vmax.f32 %v471, 0.0
        %v490 = vmax.f32 %v485, 0.0
        %v491 = vpack.c.bf16 %v489, %v487
        %v492 = vpack.c.bf16 %v490, %v488
        %v493 = vld [vmem:[#allocation8] sm:$0xf]
        %v494 = vld [vmem:[#allocation8 + $0x4] sm:$0xf]
        %v495 = vld [vmem:[#allocation8 + $0x8] sm:$0xf]
        %v496 = vld [vmem:[#allocation8 + $0xc] sm:$0xf]
        %v497 = vld [vmem:[#allocation8 + $0x10] sm:$0xf]
        %v498 = vld [vmem:[#allocation8 + $0x14] sm:$0xf]
        %v499 = vld [vmem:[#allocation8 + $0x18] sm:$0xf]
        %v500 = vld [vmem:[#allocation8 + $0x1c] sm:$0xf]
        %v501 = vld [vmem:[#allocation8 + $0x20] sm:$0xf]
        %v502 = vld [vmem:[#allocation8 + $0x24] sm:$0xf]
        %v503 = vld [vmem:[#allocation8 + $0x28] sm:$0xf]
        %v504 = vld [vmem:[#allocation8 + $0x2c] sm:$0xf]
        %v505 = vld [vmem:[#allocation8 + $0x30] sm:$0xf]
        %v506 = vld [vmem:[#allocation8 + $0x34] sm:$0xf]
        %v507 = vld [vmem:[#allocation8 + $0x38] sm:$0xf]
        %v508 = vld [vmem:[#allocation8 + $0x3c] sm:$0xf]
        %v509 = vld [vmem:[#allocation8 + $0x40] sm:$0xf]
        %v510 = vld [vmem:[#allocation8 + $0x44] sm:$0xf]
        %v511 = vld [vmem:[#allocation8 + $0x48] sm:$0xf]
        %v512 = vld [vmem:[#allocation8 + $0x4c] sm:$0xf]
        %v513 = vld [vmem:[#allocation8 + $0x50] sm:$0xf]
        %v514 = vld [vmem:[#allocation8 + $0x54] sm:$0xf]
        %v515 = vld [vmem:[#allocation8 + $0x58] sm:$0xf]
        %v516 = vld [vmem:[#allocation8 + $0x5c] sm:$0xf]
        %v517 = vld [vmem:[#allocation8 + $0x60] sm:$0xf]
        %v518 = vld [vmem:[#allocation8 + $0x64] sm:$0xf]
        %v519 = vld [vmem:[#allocation8 + $0x68] sm:$0xf]
        %v520 = vld [vmem:[#allocation8 + $0x6c] sm:$0xf]
        %v521 = vld [vmem:[#allocation8 + $0x70] sm:$0xf]
        %v522 = vld [vmem:[#allocation8 + $0x74] sm:$0xf]
        %v523 = vld [vmem:[#allocation8 + $0x78] sm:$0xf]
        %v524 = vld [vmem:[#allocation8 + $0x7c] sm:$0xf]
        %v525 = vld [vmem:[%s4] sm:$0x1]
        %v527 = vperm.slane %v525, 0
        %v561 = vunpack.c.l.b16 %v493
        %v562 = vunpack.c.l.b16 %v494
        %v563 = vunpack.c.l.b16 %v495
        %v564 = vunpack.c.l.b16 %v496
        %v565 = vunpack.c.l.b16 %v497
        %v566 = vunpack.c.l.b16 %v498
        %v567 = vunpack.c.l.b16 %v499
        %v568 = vunpack.c.l.b16 %v500
        %v569 = vunpack.c.l.b16 %v501
        %v570 = vunpack.c.l.b16 %v502
        %v571 = vunpack.c.l.b16 %v503
        %v572 = vunpack.c.l.b16 %v504
        %v573 = vunpack.c.l.b16 %v505
        %v574 = vunpack.c.l.b16 %v506
        %v575 = vunpack.c.l.b16 %v507
        %v576 = vunpack.c.l.b16 %v508
        %v577 = vunpack.c.l.b16 %v509
        %v578 = vunpack.c.l.b16 %v510
        %v579 = vunpack.c.l.b16 %v511
        %v580 = vunpack.c.l.b16 %v512
        %v581 = vunpack.c.l.b16 %v513
        %v582 = vunpack.c.l.b16 %v514
        %v583 = vunpack.c.l.b16 %v515
        %v584 = vunpack.c.l.b16 %v516
        %v585 = vunpack.c.l.b16 %v517
        %v586 = vunpack.c.l.b16 %v518
        %v587 = vunpack.c.l.b16 %v519
        %v588 = vunpack.c.l.b16 %v520
        %v589 = vunpack.c.l.b16 %v521
        %v590 = vunpack.c.l.b16 %v522
        %v591 = vunpack.c.l.b16 %v523
        %v592 = vunpack.c.l.b16 %v524
        %v593 = vpack.c.b16 %v562, %v561
        %v594 = vpack.c.b16 %v564, %v563
        %v595 = vpack.c.b16 %v566, %v565
        %v596 = vpack.c.b16 %v568, %v567
        %v597 = vpack.c.b16 %v570, %v569
        %v598 = vpack.c.b16 %v572, %v571
        %v599 = vpack.c.b16 %v574, %v573
        %v600 = vpack.c.b16 %v576, %v575
        %v601 = vpack.c.b16 %v578, %v577
        %v602 = vpack.c.b16 %v580, %v579
        %v603 = vpack.c.b16 %v582, %v581
        %v604 = vpack.c.b16 %v584, %v583
        %v605 = vpack.c.b16 %v586, %v585
        %v606 = vpack.c.b16 %v588, %v587
        %v607 = vpack.c.b16 %v590, %v589
        %v608 = vpack.c.b16 %v592, %v591
        %625 = vmatpush.bf16.msra.mxu0 %v600
        %626 = vmatpush.bf16.msra.mxu0 %v599
        %627 = vmatpush.bf16.msra.mxu0 %v598
        %628 = vmatpush.bf16.msra.mxu0 %v597
        %629 = vmatpush.bf16.msra.mxu0 %v596
        %630 = vmatpush.bf16.msra.mxu0 %v595
        %631 = vmatpush.bf16.msra.mxu0 %v594
        %632 = vmatpush.bf16.msra.mxu0 %v593
        %633 = vmatmul.bf16.gmra.mxu0 %v491
        %v634 = vpop.f32.mrf.mxu0
        %v635 = vadd.f32 %v527, %v634
        %v636 = vpop.f32.mrf.mxu0
        %v637 = vadd.f32 %v527, %v636
        %638 = vdwg.mxu0
        %639 = vmatpush.bf16.msra.mxu0 %v608
        %640 = vmatpush.bf16.msra.mxu0 %v607
        %641 = vmatpush.bf16.msra.mxu0 %v606
        %642 = vmatpush.bf16.msra.mxu0 %v605
        %643 = vmatpush.bf16.msra.mxu0 %v604
        %644 = vmatpush.bf16.msra.mxu0 %v603
        %645 = vmatpush.bf16.msra.mxu0 %v602
        %646 = vmatpush.bf16.msra.mxu0 %v601
        %647 = vmatmul.bf16.gmra.mxu0 %v492
        %v648 = vpop.f32.mrf.mxu0
        %v649 = vadd.f32 %v635, %v648
        %v650 = vpop.f32.mrf.mxu0
        %v651 = vadd.f32 %v637, %v650
        %652 = vdwg.mxu0
        %v653 = vunpack.c.l.bf16 %v349
        %v654 = vunpack.c.l.bf16 %v350
        %v655 = vadd.f32 %v649, %v653
        %v656 = vadd.f32 %v651, %v654
        %v657 = vld [vmem:[%s5] sm:$0x1]
        %v658 = vld [vmem:[%s6] sm:$0x1]
        %659 = vadd.xlane.f32.xlu0 %v655
        %v660 = vpop.xlane.xlu0 %659
        %661 = vadd.xlane.f32.xlu0 %v656
        %v662 = vpop.xlane.xlu0 %661
        %v663 = vrcp.pop 128.0
        %v664 = vmul.f32 128.0, %v663
        %v665 = vsub.f32 1.0, %v664
        %v666 = vmul.f32 %v663, %v665
        %v667 = vadd.f32 %v663, %v666
        %vm668 = vweird.f32 %v663
        %v669 = vsel %vm668, %v663, %v667
        %v670 = vmul.f32 %v660, %v669
        %v671 = vmul.f32 %v662, %v669
        %v672 = vmul.f32 %v655, %v655
        %v673 = vmul.f32 %v656, %v656
        %674 = vadd.xlane.f32.xlu0 %v672
        %v675 = vpop.xlane.xlu0 %674
        %676 = vadd.xlane.f32.xlu0 %v673
        %v677 = vpop.xlane.xlu0 %676
        %v678 = vmul.f32 %v675, %v669
        %v679 = vmul.f32 %v677, %v669
        %v680 = vmul.f32 %v670, %v670
        %v681 = vmul.f32 %v671, %v671
        %v682 = vsub.f32 %v678, %v680
        %v683 = vsub.f32 %v679, %v681
        %v684 = vmax.f32 %v682, 0.0
        %v685 = vmax.f32 %v683, 0.0
        %v686 = vadd.f32 %v684, 1e-05
        %v687 = vadd.f32 %v685, 1e-05
        %v688 = vrsqrt.pop %v686
        %v689 = vmul.f32 %v688, %v686
        %v690 = vmul.f32 %v689, %v688
        %v691 = vmul.f32 0.5, %v690
        %v692 = vsub.f32 1.5, %v691
        %v693 = vmul.f32 %v688, %v692
        %vm694 = vweird.f32 %v686
        %vm695 = vweird.f32 %v688
        %vm696 = vmor %vm694, %vm695
        %v697 = vsel %vm696, %v688, %v693
        %v698 = vrsqrt.pop %v687
        %v699 = vmul.f32 %v698, %v687
        %v700 = vmul.f32 %v699, %v698
        %v701 = vmul.f32 0.5, %v700
        %v702 = vsub.f32 1.5, %v701
        %v703 = vmul.f32 %v698, %v702
        %vm704 = vweird.f32 %v687
        %vm705 = vweird.f32 %v698
        %vm706 = vmor %vm704, %vm705
        %v707 = vsel %vm706, %v698, %v703
        %v708 = vsub.f32 %v655, %v670
        %v709 = vsub.f32 %v656, %v671
        %v710 = vmul.f32 %v708, %v697
        %v711 = vmul.f32 %v709, %v707
        %v713 = vperm.slane %v657, 0
        %v715 = vmul.f32 %v710, %v713
        %v716 = vmul.f32 %v711, %v713
        %v718 = vperm.slane %v658, 0
        %v720 = vadd.f32 %v715, %v718
        %v721 = vadd.f32 %v716, %v718
        %722 = vst [vmem:[%s346] sm:$0xff] %v720
        %723 = vst [vmem:[%s346 + $0x8] sm:$0xff] %v721
        %s724 = sand.u32 %s186, 1
        %s725 = scalar_lea.sflag [#allocation4], %s724
        %s726 = sand.u32 %s186, 1
        %s727 = smul.addr %s726, 16
        %s728 = scalar_lea.vmem [#allocation10], %s727
        // Predicated region
        $region65: #{tpu_custom_call.1} parent=47 // pred_check
          %p729 = pneg %p196
        $region66: #{tpu_custom_call.1} parent=47 // pred_check_branch
          %731 = sbr.rel (%p729) target = $region68
        $region67: #{tpu_custom_call.1} parent=47 // pred_region
          %s732 = smul.u32 2, %s26
          %734 = vsyncadd %s725, 0
          %s735 = smul.addr %s732, 8
          %s736 = scalar_lea.hbm %s7, %s735
          %s737 = sshll.u32 %s728, 4
          %s738 = int_to_ptr.vmem [resolvable:$true] %s737
          %s739 = sshll.u32 %s736, 4
          %s740 = int_to_ptr.hbm [resolvable:$true] %s739
          %745 = dma.vmem_to_hbm [thread:$0]  %s738, 256, %s740, %s725, 128, 128, 8
        $region68: #{tpu_custom_call.1} parent=47 // pred_fallthru
          _
      $region48: #{tpu_custom_call.1} parent=5 // pred_fallthru
        _
      %p746 = scmp.le.s32.totalorder 2, %s21
      // Predicated region
      $region69: #{tpu_custom_call.1} parent=5 // pred_check
        %p747 = pneg %p746
      $region70: #{tpu_custom_call.1} parent=5 // pred_check_branch
        %749 = sbr.rel (%p747) target = $region72
      $region71: #{tpu_custom_call.1} parent=5 // pred_region
        %s750 = ssub.s32 %s21, 2
        // Predicated region
        $region73: #{tpu_custom_call.1} parent=71 // pred_check
          %p751 = pneg %p202
        $region74: #{tpu_custom_call.1} parent=71 // pred_check_branch
          %753 = sbr.rel (%p751) target = $region76
        $region75: #{tpu_custom_call.1} parent=71 // pred_region
          %s754 = sand.u32 %s187, 1
          %s755 = scalar_lea.sflag [#allocation4], %s754
          %s756 = sand.u32 %s187, 1
          %s757 = smul.addr %s756, 16
          %s758 = scalar_lea.vmem [#allocation10], %s757
          %760 = dma.done %s755, 256
        $region76: #{tpu_custom_call.1} parent=71 // pred_fallthru
          _
      $region72: #{tpu_custom_call.1} parent=5 // pred_fallthru
        _
    $region6: #{tpu_custom_call.1} parent=1 // loop_footer
      %s25 = sadd.s32 1, %s21
    $region7: #{tpu_custom_call.1} parent=1 // loop_footer_branch
      %20 = sbr.rel target = $region3
    $region8: #{tpu_custom_call.1} parent=1 // loop_exit
      _
    %761 = vsyncpa [#allocation3], 1
    %s762 = scalar_lea.sflag [#allocation3], 1
    %763 = vsyncpa %s762, 1
    %764 = vsyncpa [#allocation6], 1
    %765 = vsyncpa [#allocation9], 1
    %766 = vsyncpa [#allocation4], 1
    %s767 = scalar_lea.sflag [#allocation4], 1
    %768 = vsyncpa %s767, 1

</llo_original>
